<compile_context>
chip_gen: v6e
topology: v6e:2x2x1
jax: 0.10.0
libtpu: 0.0.40
codegen_flags: <defaults>
</compile_context>

<pallas_src>
import jax
import jax.numpy as jnp
from jax.experimental import pallas as pl
from jax.experimental.pallas import tpu as pltpu


def _mlp_sigmoid_kernel(x_ref, w1_ref, b1_ref, w2_ref, b2_ref, out_ref):
    """Fused: sigmoid(relu(x @ W1 + b1) . w2 + b2) for one batch tile.

    x_ref  : (TB, D)  f32   VMEM   -- batch tile (cast to bf16 in-kernel)
    w1_ref : (D, H)   bf16  VMEM   -- resident, single-buffered
    b1_ref : (1, H)   f32   VMEM   -- resident
    w2_ref : (1, H)   f32   VMEM   -- second layer (N == 1) stored as a row
    b2_ref : (1,)     f32   SMEM   -- scalar bias
    out_ref: (1, TB)  f32   VMEM   -- lane-dense output slab
    """
    # In-kernel bf16 cast of the batch tile: cheap VPU work hidden under the
    # tile DMA, avoids a separate full-HBM cast pass in the wrapper.
    x_bf = x_ref[...].astype(jnp.bfloat16)

    # Layer 1 on the MXU with f32 accumulation; bias + ReLU on the VPU in f32.
    h = jnp.dot(x_bf, w1_ref[...], preferred_element_type=jnp.float32)
    h = jnp.maximum(h + b1_ref[...], 0.0)                                   # (TB, H)

    # Layer 2 has a single output column: VPU multiply + XLU cross-lane
    # reduction instead of a 1/128-lane-utilization MXU matmul.
    logits_col = jnp.sum(h * w2_ref[...], axis=-1, keepdims=True)           # (TB, 1)

    # Relayout to the lane-dense (1, TB) row *before* the transcendental
    # epilogue (the relayout happens anyway for the store); exp/recip then
    # touch ceil(TB/128) vregs instead of TB/8.
    logits_row = logits_col.reshape(out_ref.shape) + b2_ref[0]              # (1, TB)
    probs = pl.reciprocal(1.0 + jnp.exp(-logits_row), approx=True)

    # Unmasked lane-dense store.
    out_ref[...] = probs.astype(out_ref.dtype)


def _round_up(v, m):
    return ((v + m - 1) // m) * m


def _vmem_capacity_bytes():
    """Generation-aware VMEM capacity; conservative fallback if unqueryable."""
    try:
        return int(pltpu.get_tpu_info().vmem_capacity_bytes)
    except Exception:
        return 64 * 1024 * 1024  # assume v7x-like (64 MiB per TensorCore)


def neural_net1_forward(x, w1_bf16, b1, w2_row, b2):
    """Pallas wrapper: batch-tiled parallel grid, resident single-buffered weights,
    lane-dense output slab reshaped to the PyTorch (B, 1) column."""
    B, D = x.shape
    H = w1_bf16.shape[1]
    assert w1_bf16.shape == (D, H)
    assert b1.shape == (1, H)
    assert w2_row.shape == (1, H)
    assert b2.shape == (1,)

    # --- generation-aware tile / VMEM budget -------------------------------
    vmem_cap = _vmem_capacity_bytes()
    big_vmem = vmem_cap >= 100 * 1024 * 1024          # v5e / v6e: 128 MiB
    max_tb = 1024 if big_vmem else 512                # v7x: keep tiles smaller
    vmem_limit = (100 if big_vmem else 48) * 1024 * 1024

    if B <= 256:
        # Small batch: one lane-dense tile (lane width a multiple of 128).
        tb = max(128, _round_up(B, 128))
    else:
        # >= 2 tiles so the "parallel" batch axis feeds both TensorCores on v7x.
        tb = min(max_tb, _round_up(pl.cdiv(B, 2), 128))

    # Rough VMEM budget; shrink the batch tile if oversubscribed.
    def _vmem_bytes(tb_):
        x_bufs = 2 * tb_ * D * 4          # double-buffered f32 x tiles
        w1_buf = D * H * 2                # single-buffered bf16 W1 (resident)
        rows = 2 * H * 4                  # resident b1 + w2 rows
        out_bufs = 2 * tb_ * 4            # double-buffered (1, tb) output rows
        tmp = 2 * tb_ * H * 4             # h tile + epilogue temporaries (f32)
        return x_bufs + w1_buf + rows + out_bufs + tmp

    while tb > 128 and _vmem_bytes(tb) > (3 * vmem_limit) // 4:
        tb = max(128, _round_up(tb // 2, 128))

    # NOTE: W1 is kept fully resident (single-buffered bf16). If D*H ever grows
    # to a large fraction of the VMEM limit, switch to a K (D) reduction grid
    # axis with an f32 accumulator (pl.when init/finalize) or tile H instead.

    b_pad = pl.cdiv(B, tb) * tb
    if b_pad != B:
        x = jnp.pad(x, ((0, b_pad - B), (0, 0)))
    num_tiles = b_pad // tb

    out_row = pl.pallas_call(
        _mlp_sigmoid_kernel,
        out_shape=jax.ShapeDtypeStruct((1, b_pad), jnp.float32),
        grid=(num_tiles,),
        in_specs=[
            # f32 batch tile of x; bf16 cast happens inside the kernel.
            pl.BlockSpec((tb, D), lambda i: (i, 0)),
            # Resident weights: constant index_map -> single buffer is enough.
            pl.BlockSpec((D, H), lambda i: (0, 0), pipeline_mode=pl.Buffered(1)),
            pl.BlockSpec((1, H), lambda i: (0, 0), pipeline_mode=pl.Buffered(1)),
            pl.BlockSpec((1, H), lambda i: (0, 0), pipeline_mode=pl.Buffered(1)),
            # Scalar b2 in SMEM.
            pl.BlockSpec(memory_space=pltpu.MemorySpace.SMEM),
        ],
        out_specs=pl.BlockSpec((1, tb), lambda i: (0, i)),       # lane-dense slab
        compiler_params=pltpu.CompilerParams(
            # Shard batch tiles across both TensorCores on v7x; no-op on v5e/v6e.
            dimension_semantics=("parallel",),
            vmem_limit_bytes=vmem_limit,
        ),
    )(x, w1_bf16, b1, w2_row, b2)

    # Back to the PyTorch-convention (B, 1) column, dropping any batch padding.
    return out_row.reshape(b_pad, 1)[:B]


def init_params(key, input_size, hidden_size):
    """Deterministic init mimicking nn.Linear's U(-1/sqrt(fan_in), 1/sqrt(fan_in)).
    W1 is stored as [in, out] and pre-cast to bf16 ONCE here (MXU operand dtype);
    the second layer (out_features=1) is stored as a [1, H] f32 row."""
    k1, k2, k3, k4 = jax.random.split(key, 4)
    bound1 = 1.0 / jnp.sqrt(input_size)
    bound2 = 1.0 / jnp.sqrt(hidden_size)
    w1 = jax.random.uniform(k1, (input_size, hidden_size), jnp.float32, -bound1, bound1)
    b1 = jax.random.uniform(k2, (1, hidden_size), jnp.float32, -bound1, bound1)
    w2_row = jax.random.uniform(k3, (1, hidden_size), jnp.float32, -bound2, bound2)
    b2 = jax.random.uniform(k4, (1,), jnp.float32, -bound2, bound2)
    return w1.astype(jnp.bfloat16), b1, w2_row, b2


if __name__ == "__main__":
    key = jax.random.PRNGKey(0)
    k_x, k_p = jax.random.split(key)

    batch = 8
    input_size = 32
    hidden_size = 32

    x = jax.random.normal(k_x, (batch, input_size), dtype=jnp.float32)
    w1_bf16, b1, w2_row, b2 = init_params(k_p, input_size, hidden_size)

    y_pred = neural_net1_forward(x, w1_bf16, b1, w2_row, b2)
    y_pred = jax.block_until_ready(y_pred)

    # Plain-JAX f32 reference using the same stored (bf16) W1. The kernel uses a
    # bf16 x operand and an approximate EUP reciprocal, so compare with a
    # relaxed tolerance.
    w1_f32 = w1_bf16.astype(jnp.float32)
    ref = jax.nn.sigmoid(jnp.maximum(x @ w1_f32 + b1, 0.0) @ w2_row.T + b2)
    assert y_pred.shape == (batch, 1)
    assert jnp.allclose(y_pred, ref, atol=2e-2, rtol=2e-2)

    print("KERNEL_OK")
</pallas_src>

<mosaic_0001>
module attributes {stable_mosaic.version = 11 : i64} {
  func.func @_mlp_sigmoid_kernel(%arg0: i32, %arg1: memref<128x32xf32, #tpu.memory_space<vmem>>, %arg2: memref<32x32xbf16, #tpu.memory_space<vmem>>, %arg3: memref<1x32xf32, #tpu.memory_space<vmem>>, %arg4: memref<1x32xf32, #tpu.memory_space<vmem>>, %arg5: memref<1xf32, #tpu.memory_space<smem>>, %arg6: memref<1x128xf32, #tpu.memory_space<vmem>>) attributes {dimension_semantics = [#tpu.dimension_semantics<parallel>], iteration_bounds = array<i64: 1>, scalar_prefetch = 0 : i64, scratch_operands = 0 : i64, tpu.core_type = #tpu.core_type<tc>, window_params = [{transform_indices = @transform_0, window_bounds = array<i64: 128, 32>}, {pipeline_mode = #tpu.pipeline_mode<synchronous>, transform_indices = @transform_1, window_bounds = array<i64: 32, 32>}, {pipeline_mode = #tpu.pipeline_mode<synchronous>, transform_indices = @transform_2, window_bounds = array<i64: 1, 32>}, {pipeline_mode = #tpu.pipeline_mode<synchronous>, transform_indices = @transform_3, window_bounds = array<i64: 1, 32>}, {transform_indices = @transform_4, window_bounds = array<i64: 1>}, {transform_indices = @transform_5, window_bounds = array<i64: 1, 128>}]} {
    %c0 = arith.constant 0 : index
    %c0_0 = arith.constant 0 : index
    %0 = vector.load %arg1[%c0, %c0_0] : memref<128x32xf32, #tpu.memory_space<vmem>>, vector<128x32xf32>
    %1 = arith.truncf %0 : vector<128x32xf32> to vector<128x32xbf16>
    %c0_1 = arith.constant 0 : index
    %c0_2 = arith.constant 0 : index
    %2 = vector.load %arg2[%c0_1, %c0_2] : memref<32x32xbf16, #tpu.memory_space<vmem>>, vector<32x32xbf16>
    %cst = arith.constant dense<0.000000e+00> : vector<128x32xf32>
    %3 = tpu.matmul %1, %2, %cst {dimension_numbers = #tpu.dot_dimension_numbers<[1], [0], [0], [1], [0, 0, 1, 1], [], []>} : vector<128x32xbf16>, vector<32x32xbf16>, vector<128x32xf32> -> vector<128x32xf32>
    %c0_3 = arith.constant 0 : index
    %c0_4 = arith.constant 0 : index
    %4 = vector.load %arg3[%c0_3, %c0_4] : memref<1x32xf32, #tpu.memory_space<vmem>>, vector<1x32xf32>
    %5 = vector.broadcast %4 : vector<1x32xf32> to vector<128x32xf32>
    %6 = arith.addf %3, %5 : vector<128x32xf32>
    %cst_5 = arith.constant 0.000000e+00 : f32
    %7 = vector.broadcast %cst_5 : f32 to vector<128x32xf32>
    %8 = arith.maximumf %6, %7 : vector<128x32xf32>
    %c0_6 = arith.constant 0 : index
    %c0_7 = arith.constant 0 : index
    %9 = vector.load %arg4[%c0_6, %c0_7] : memref<1x32xf32, #tpu.memory_space<vmem>>, vector<1x32xf32>
    %10 = vector.broadcast %9 : vector<1x32xf32> to vector<128x32xf32>
    %11 = arith.mulf %8, %10 : vector<128x32xf32>
    %cst_8 = arith.constant dense<0.000000e+00> : vector<128xf32>
    %12 = vector.multi_reduction <add>, %11, %cst_8 [1] : vector<128x32xf32> to vector<128xf32>
    %13 = vector.shape_cast %12 : vector<128xf32> to vector<128x1xf32>
    %14 = vector.shape_cast %13 : vector<128x1xf32> to vector<1x128xf32>
    %c0_9 = arith.constant 0 : index
    %15 = memref.load %arg5[%c0_9] : memref<1xf32, #tpu.memory_space<smem>>
    %16 = vector.broadcast %15 : f32 to vector<1x128xf32>
    %17 = arith.addf %14, %16 : vector<1x128xf32>
    %cst_10 = arith.constant 0.000000e+00 : f32
    %18 = vector.broadcast %cst_10 : f32 to vector<1x128xf32>
    %19 = arith.subf %18, %17 : vector<1x128xf32>
    %20 = math.exp %19 : vector<1x128xf32>
    %cst_11 = arith.constant 1.000000e+00 : f32
    %21 = vector.broadcast %cst_11 : f32 to vector<1x128xf32>
    %22 = arith.addf %21, %20 : vector<1x128xf32>
    %23 = tpu.reciprocal %22 {approx = true} : vector<1x128xf32> -> vector<1x128xf32>
    %c0_12 = arith.constant 0 : index
    %c0_13 = arith.constant 0 : index
    %24 = vector.load %arg6[%c0_12, %c0_13] : memref<1x128xf32, #tpu.memory_space<vmem>>, vector<1x128xf32>
    tpu.vector_store %arg6[%c0_12, %c0_13], %23 {strides = array<i32>} : memref<1x128xf32, #tpu.memory_space<vmem>>, vector<1x128xf32>,
    return
  }
  func.func @transform_0(%arg0: i32) -> (i32, i32) {
    %c0_i32 = arith.constant 0 : i32
    %c0_i32_0 = arith.constant 0 : i32
    return %arg0, %c0_i32 : i32, i32
  }
  func.func @transform_1(%arg0: i32) -> (i32, i32) {
    %c0_i32 = arith.constant 0 : i32
    %c0_i32_0 = arith.constant 0 : i32
    %c0_i32_1 = arith.constant 0 : i32
    return %c0_i32, %c0_i32_0 : i32, i32
  }
  func.func @transform_2(%arg0: i32) -> (i32, i32) {
    %c0_i32 = arith.constant 0 : i32
    %c0_i32_0 = arith.constant 0 : i32
    %c0_i32_1 = arith.constant 0 : i32
    return %c0_i32, %c0_i32_0 : i32, i32
  }
  func.func @transform_3(%arg0: i32) -> (i32, i32) {
    %c0_i32 = arith.constant 0 : i32
    %c0_i32_0 = arith.constant 0 : i32
    %c0_i32_1 = arith.constant 0 : i32
    return %c0_i32, %c0_i32_0 : i32, i32
  }
  func.func @transform_4(%arg0: i32) -> i32 {
    %c0_i32 = arith.constant 0 : i32
    %c0_i32_0 = arith.constant 0 : i32
    return %c0_i32 : i32
  }
  func.func @transform_5(%arg0: i32) -> (i32, i32) {
    %c0_i32 = arith.constant 0 : i32
    %c0_i32_0 = arith.constant 0 : i32
    return %c0_i32, %arg0 : i32, i32
  }
}

</mosaic_0001>

<llo_original>
// kernel: tpu_custom_call.1
$region0: #{tpu_custom_call.1}
  #allocation0 [shape = 'u32[]', space=smem, size = 0x4, offset = 0x4, fixed_abs, tag = 'smem constant byte address 0x4 - core index']
  #allocation1 [shape = 'u32[144,128]{1,0:T(1,128)}', space=vmem, size = 0x12000, scoped, tag = 'internal scratch']
  #allocation2 [shape = 'f32[1]{0:T(128)S(6)}', space=smem, size = 0x200, scoped, tag = 'scoped memory for tpu_custom_call.1']
  %s0 = inlined_call_operand.vmem [shape: f32[128,32], index: 0, kind: input, shape index: {}]
  %s1 = inlined_call_operand.vmem [shape: bf16[32,32], index: 1, kind: input, shape index: {}]
  %s2 = inlined_call_operand.vmem [shape: f32[1,32], index: 2, kind: input, shape index: {}]
  %s3 = inlined_call_operand.vmem [shape: f32[1,32], index: 3, kind: input, shape index: {}]
  %s4 = inlined_call_operand.<no memory space> [shape: f32[1], index: 4, kind: input, shape index: {}]
  %s5 = inlined_call_operand.hbm [shape: f32[1,128], index: 5, kind: output, shape index: {}]
  %s6 = sld [smem:[#allocation0]]
  $region30: #{tpu_custom_call.1} parent=0
    _
  %s8 = ssub.s32 1, %s6
  %s9 = scalar_select 0, %s8, %s6
  %10 = sst [smem:[#allocation2]] %s4
  $region1: #{tpu_custom_call.1} parent=0
    #allocation3 [shape = 'u8[512]{0}', space=vmem, size = 0x400, scoped, tag = 'output window, operand 0, single buffered']
    #allocation4 [shape = 's32[1]{0}', space=sflag, size = 0x4, scoped, tag = 'scoped memory for tpu_custom_call.1']
    %11 = vsyncpa [#allocation4], 0
    // Predicated region
    $region2: #{tpu_custom_call.1} parent=1 // pred_check
      _
    $region3: #{tpu_custom_call.1} parent=1 // pred_check_branch
      %13 = sbr.rel (0) target = $region5
    $region4: #{tpu_custom_call.1} parent=1 // pred_region
      _
    $region5: #{tpu_custom_call.1} parent=1 // pred_fallthru
      _
    // Predicated region
    $region6: #{tpu_custom_call.1} parent=1 // pred_check
      _
    $region7: #{tpu_custom_call.1} parent=1 // pred_check_branch
      %15 = sbr.rel (0) target = $region9
    $region8: #{tpu_custom_call.1} parent=1 // pred_region
      _
    $region9: #{tpu_custom_call.1} parent=1 // pred_fallthru
      _
    // Predicated region
    $region10: #{tpu_custom_call.1} parent=1 // pred_check
      _
    $region11: #{tpu_custom_call.1} parent=1 // pred_check_branch
      %17 = sbr.rel (0) target = $region13
    $region12: #{tpu_custom_call.1} parent=1 // pred_region
      _
    $region13: #{tpu_custom_call.1} parent=1 // pred_fallthru
      _
    // Predicated region
    $region14: #{tpu_custom_call.1} parent=1 // pred_check
      _
    $region15: #{tpu_custom_call.1} parent=1 // pred_check_branch
      %19 = sbr.rel (0) target = $region17
    $region16: #{tpu_custom_call.1} parent=1 // pred_region
      _
    $region17: #{tpu_custom_call.1} parent=1 // pred_fallthru
      _
    // Predicated region
    $region18: #{tpu_custom_call.1} parent=1 // pred_check
      _
    $region19: #{tpu_custom_call.1} parent=1 // pred_check_branch
      %21 = sbr.rel (0) target = $region21
    $region20: #{tpu_custom_call.1} parent=1 // pred_region
      _
    $region21: #{tpu_custom_call.1} parent=1 // pred_fallthru
      _
    %v23 = vld [vmem:[%s0] sm:$0xff]
    %v24 = vld [vmem:[%s0 + $0x8] sm:$0xff]
    %v25 = vld [vmem:[%s0 + $0x10] sm:$0xff]
    %v26 = vld [vmem:[%s0 + $0x18] sm:$0xff]
    %v27 = vld [vmem:[%s0 + $0x20] sm:$0xff]
    %v28 = vld [vmem:[%s0 + $0x28] sm:$0xff]
    %v29 = vld [vmem:[%s0 + $0x30] sm:$0xff]
    %v30 = vld [vmem:[%s0 + $0x38] sm:$0xff]
    %v31 = vld [vmem:[%s0 + $0x40] sm:$0xff]
    %v32 = vld [vmem:[%s0 + $0x48] sm:$0xff]
    %v33 = vld [vmem:[%s0 + $0x50] sm:$0xff]
    %v34 = vld [vmem:[%s0 + $0x58] sm:$0xff]
    %v35 = vld [vmem:[%s0 + $0x60] sm:$0xff]
    %v36 = vld [vmem:[%s0 + $0x68] sm:$0xff]
    %v37 = vld [vmem:[%s0 + $0x70] sm:$0xff]
    %v38 = vld [vmem:[%s0 + $0x78] sm:$0xff]
    %v39 = vpack.c.bf16 %v24, %v23
    %v40 = vpack.c.bf16 %v26, %v25
    %v41 = vpack.c.bf16 %v28, %v27
    %v42 = vpack.c.bf16 %v30, %v29
    %v43 = vpack.c.bf16 %v32, %v31
    %v44 = vpack.c.bf16 %v34, %v33
    %v45 = vpack.c.bf16 %v36, %v35
    %v46 = vpack.c.bf16 %v38, %v37
    %v47 = vld [vmem:[%s1] sm:$0xf]
    %v48 = vld [vmem:[%s1 + $0x4] sm:$0xf]
    %v49 = vld [vmem:[%s1 + $0x8] sm:$0xf]
    %v50 = vld [vmem:[%s1 + $0xc] sm:$0xf]
    %v51 = vld [vmem:[%s2] sm:$0x1]
    %v53 = vlaneseq
    %v54 = vshrl.u32 %v53, 7
    %v55 = vsub.s32 0, %v54
    %v56 = vrot.slane %v51, %v55
    %v62 = vunpack.c.l.b16 %v47
    %v63 = vunpack.c.l.b16 %v48
    %v64 = vunpack.c.l.b16 %v49
    %v65 = vunpack.c.l.b16 %v50
    %v66 = vpack.c.b16 %v63, %v62
    %v67 = vpack.c.b16 %v65, %v64
    %vm70 = vcmask 261120
    %v72 = vsel %vm70, %v39, 0
    %v75 = vsel %vm70, %v40, 0
    %v78 = vsel %vm70, %v41, 0
    %v81 = vsel %vm70, %v42, 0
    %v84 = vsel %vm70, %v43, 0
    %v87 = vsel %vm70, %v44, 0
    %v90 = vsel %vm70, %v45, 0
    %v93 = vsel %vm70, %v46, 0
    %95 = vmatprep.subr.bf16.mxu0 0
    %96 = vmatpush1.bf16.msra.mxu0 0
    %97 = vmatprep.subr.bf16.mxu0 0
    %98 = vmatpush1.bf16.msra.mxu0 0
    %99 = vmatprep.subr.bf16.mxu0 0
    %100 = vmatpush1.bf16.msra.mxu0 0
    %101 = vmatprep.subr.bf16.mxu0 0
    %102 = vmatpush1.bf16.msra.mxu0 0
    %103 = vmatprep.subr.bf16.mxu0 0
    %104 = vmatpush1.bf16.msra.mxu0 0
    %105 = vmatprep.subr.bf16.mxu0 0
    %106 = vmatpush1.bf16.msra.mxu0 0
    %107 = vmatprep.subr.bf16.mxu0 0
    %108 = vmatpush1.bf16.msra.mxu0 %v67
    %109 = vmatprep.subr.bf16.mxu0 0
    %110 = vmatpush1.bf16.msra.mxu0 %v66
    %111 = vmatprep.subr.bf16.mxu0 0
    %112 = vmatpush2.bf16.msra.mxu0 0
    %113 = vmatprep.subr.bf16.mxu0 0
    %114 = vmatpush2.bf16.msra.mxu0 0
    %115 = vmatprep.subr.bf16.mxu0 0
    %116 = vmatpush2.bf16.msra.mxu0 0
    %117 = vmatprep.subr.bf16.mxu0 0
    %118 = vmatpush2.bf16.msra.mxu0 0
    %119 = vmatprep.subr.bf16.mxu0 0
    %120 = vmatpush2.bf16.msra.mxu0 0
    %121 = vmatprep.subr.bf16.mxu0 0
    %122 = vmatpush2.bf16.msra.mxu0 0
    %123 = vmatprep.subr.bf16.mxu0 0
    %124 = vmatpush2.bf16.msra.mxu0 0
    %125 = vmatprep.subr.bf16.mxu0 0
    %126 = vmatpush2.bf16.msra.mxu0 0
    %127 = vmatprep.mubr.bf16.mxu0 0
    %128 = vmatmul.mubr.bf16.gmra.mxu0 %v72
    %v129 = vpop.f32.mrf.mxu0
    %v130 = vadd.f32 %v56, %v129
    %v131 = vpop.f32.mrf.mxu0
    %v132 = vpop.f32.mrf.mxu0
    %v133 = vadd.f32 %v56, %v132
    %v134 = vpop.f32.mrf.mxu0
    %135 = vmatprep.mubr.bf16.mxu0 0
    %136 = vmatmul.mubr.bf16.gmra.mxu0 %v75
    %v137 = vpop.f32.mrf.mxu0
    %v138 = vadd.f32 %v56, %v137
    %v139 = vpop.f32.mrf.mxu0
    %v140 = vpop.f32.mrf.mxu0
    %v141 = vadd.f32 %v56, %v140
    %v142 = vpop.f32.mrf.mxu0
    %143 = vmatprep.mubr.bf16.mxu0 0
    %144 = vmatmul.mubr.bf16.gmra.mxu0 %v78
    %v145 = vpop.f32.mrf.mxu0
    %v146 = vadd.f32 %v56, %v145
    %v147 = vpop.f32.mrf.mxu0
    %v148 = vpop.f32.mrf.mxu0
    %v149 = vadd.f32 %v56, %v148
    %v150 = vpop.f32.mrf.mxu0
    %151 = vmatprep.mubr.bf16.mxu0 0
    %152 = vmatmul.mubr.bf16.gmra.mxu0 %v81
    %v153 = vpop.f32.mrf.mxu0
    %v154 = vadd.f32 %v56, %v153
    %v155 = vpop.f32.mrf.mxu0
    %v156 = vpop.f32.mrf.mxu0
    %v157 = vadd.f32 %v56, %v156
    %v158 = vpop.f32.mrf.mxu0
    %159 = vmatprep.mubr.bf16.mxu0 0
    %160 = vmatmul.mubr.bf16.gmra.mxu0 %v84
    %v161 = vpop.f32.mrf.mxu0
    %v162 = vadd.f32 %v56, %v161
    %v163 = vpop.f32.mrf.mxu0
    %v164 = vpop.f32.mrf.mxu0
    %v165 = vadd.f32 %v56, %v164
    %v166 = vpop.f32.mrf.mxu0
    %167 = vmatprep.mubr.bf16.mxu0 0
    %168 = vmatmul.mubr.bf16.gmra.mxu0 %v87
    %v169 = vpop.f32.mrf.mxu0
    %v170 = vadd.f32 %v56, %v169
    %v171 = vpop.f32.mrf.mxu0
    %v172 = vpop.f32.mrf.mxu0
    %v173 = vadd.f32 %v56, %v172
    %v174 = vpop.f32.mrf.mxu0
    %175 = vmatprep.mubr.bf16.mxu0 0
    %176 = vmatmul.mubr.bf16.gmra.mxu0 %v90
    %v177 = vpop.f32.mrf.mxu0
    %v178 = vadd.f32 %v56, %v177
    %v179 = vpop.f32.mrf.mxu0
    %v180 = vpop.f32.mrf.mxu0
    %v181 = vadd.f32 %v56, %v180
    %v182 = vpop.f32.mrf.mxu0
    %183 = vmatprep.mubr.bf16.mxu0 0
    %184 = vmatmul.mubr.bf16.gmra.mxu0 %v93
    %v185 = vpop.f32.mrf.mxu0
    %v186 = vadd.f32 %v56, %v185
    %v187 = vpop.f32.mrf.mxu0
    %v188 = vpop.f32.mrf.mxu0
    %v189 = vadd.f32 %v56, %v188
    %v190 = vpop.f32.mrf.mxu0
    %191 = vdwg.mxu0
    %v192 = vmax.f32 %v130, 0.0
    %v193 = vmax.f32 %v133, 0.0
    %v194 = vmax.f32 %v138, 0.0
    %v195 = vmax.f32 %v141, 0.0
    %v196 = vmax.f32 %v146, 0.0
    %v197 = vmax.f32 %v149, 0.0
    %v198 = vmax.f32 %v154, 0.0
    %v199 = vmax.f32 %v157, 0.0
    %v200 = vmax.f32 %v162, 0.0
    %v201 = vmax.f32 %v165, 0.0
    %v202 = vmax.f32 %v170, 0.0
    %v203 = vmax.f32 %v173, 0.0
    %v204 = vmax.f32 %v178, 0.0
    %v205 = vmax.f32 %v181, 0.0
    %v206 = vmax.f32 %v186, 0.0
    %v207 = vmax.f32 %v189, 0.0
    %v208 = vld [vmem:[%s3] sm:$0x1]
    %v210 = vlaneseq
    %v211 = vshrl.u32 %v210, 7
    %v212 = vsub.s32 0, %v211
    %v213 = vrot.slane %v208, %v212
    %v215 = vmul.f32 %v192, %v213
    %v216 = vmul.f32 %v193, %v213
    %v217 = vmul.f32 %v194, %v213
    %v218 = vmul.f32 %v195, %v213
    %v219 = vmul.f32 %v196, %v213
    %v220 = vmul.f32 %v197, %v213
    %v221 = vmul.f32 %v198, %v213
    %v222 = vmul.f32 %v199, %v213
    %v223 = vmul.f32 %v200, %v213
    %v224 = vmul.f32 %v201, %v213
    %v225 = vmul.f32 %v202, %v213
    %v226 = vmul.f32 %v203, %v213
    %v227 = vmul.f32 %v204, %v213
    %v228 = vmul.f32 %v205, %v213
    %v229 = vmul.f32 %v206, %v213
    %v230 = vmul.f32 %v207, %v213
    %v231 = vsel %vm70, %v215, 0.0
    %232 = vadd.xlane.f32.xlu0 %v231
    %v233 = vpop.xlane.xlu0 %232
    %v234 = vsel %vm70, %v216, 0.0
    %235 = vadd.xlane.f32.xlu0 %v234
    %v236 = vpop.xlane.xlu0 %235
    %v237 = vsel %vm70, %v217, 0.0
    %238 = vadd.xlane.f32.xlu0 %v237
    %v239 = vpop.xlane.xlu0 %238
    %v240 = vsel %vm70, %v218, 0.0
    %241 = vadd.xlane.f32.xlu0 %v240
    %v242 = vpop.xlane.xlu0 %241
    %v243 = vsel %vm70, %v219, 0.0
    %244 = vadd.xlane.f32.xlu0 %v243
    %v245 = vpop.xlane.xlu0 %244
    %v246 = vsel %vm70, %v220, 0.0
    %247 = vadd.xlane.f32.xlu0 %v246
    %v248 = vpop.xlane.xlu0 %247
    %v249 = vsel %vm70, %v221, 0.0
    %250 = vadd.xlane.f32.xlu0 %v249
    %v251 = vpop.xlane.xlu0 %250
    %v252 = vsel %vm70, %v222, 0.0
    %253 = vadd.xlane.f32.xlu0 %v252
    %v254 = vpop.xlane.xlu0 %253
    %v255 = vsel %vm70, %v223, 0.0
    %256 = vadd.xlane.f32.xlu0 %v255
    %v257 = vpop.xlane.xlu0 %256
    %v258 = vsel %vm70, %v224, 0.0
    %259 = vadd.xlane.f32.xlu0 %v258
    %v260 = vpop.xlane.xlu0 %259
    %v261 = vsel %vm70, %v225, 0.0
    %262 = vadd.xlane.f32.xlu0 %v261
    %v263 = vpop.xlane.xlu0 %262
    %v264 = vsel %vm70, %v226, 0.0
    %265 = vadd.xlane.f32.xlu0 %v264
    %v266 = vpop.xlane.xlu0 %265
    %v267 = vsel %vm70, %v227, 0.0
    %268 = vadd.xlane.f32.xlu0 %v267
    %v269 = vpop.xlane.xlu0 %268
    %v270 = vsel %vm70, %v228, 0.0
    %271 = vadd.xlane.f32.xlu0 %v270
    %v272 = vpop.xlane.xlu0 %271
    %v273 = vsel %vm70, %v229, 0.0
    %274 = vadd.xlane.f32.xlu0 %v273
    %v275 = vpop.xlane.xlu0 %274
    %v276 = vsel %vm70, %v230, 0.0
    %277 = vadd.xlane.f32.xlu0 %v276
    %v278 = vpop.xlane.xlu0 %277
    %s279 = sld [smem:[#allocation2]]
    %v280 = vstv %s279
    %v281 = vadd.f32 %v233, %v280
    %v282 = vadd.f32 %v236, %v280
    %v283 = vadd.f32 %v239, %v280
    %v284 = vadd.f32 %v242, %v280
    %v285 = vadd.f32 %v245, %v280
    %v286 = vadd.f32 %v248, %v280
    %v287 = vadd.f32 %v251, %v280
    %v288 = vadd.f32 %v254, %v280
    %v289 = vadd.f32 %v257, %v280
    %v290 = vadd.f32 %v260, %v280
    %v291 = vadd.f32 %v263, %v280
    %v292 = vadd.f32 %v266, %v280
    %v293 = vadd.f32 %v269, %v280
    %v294 = vadd.f32 %v272, %v280
    %v295 = vadd.f32 %v275, %v280
    %v296 = vadd.f32 %v278, %v280
    %v297 = vsub.f32 0.0, %v281
    %v298 = vsub.f32 0.0, %v282
    %v299 = vsub.f32 0.0, %v283
    %v300 = vsub.f32 0.0, %v284
    %v301 = vsub.f32 0.0, %v285
    %v302 = vsub.f32 0.0, %v286
    %v303 = vsub.f32 0.0, %v287
    %v304 = vsub.f32 0.0, %v288
    %v305 = vsub.f32 0.0, %v289
    %v306 = vsub.f32 0.0, %v290
    %v307 = vsub.f32 0.0, %v291
    %v308 = vsub.f32 0.0, %v292
    %v309 = vsub.f32 0.0, %v293
    %v310 = vsub.f32 0.0, %v294
    %v311 = vsub.f32 0.0, %v295
    %v312 = vsub.f32 0.0, %v296
    %v313 = vmul.f32 %v297, 1.442695
    %v314 = vpow.pop %v313
    %v315 = vmul.f32 %v298, 1.442695
    %v316 = vpow.pop %v315
    %v317 = vmul.f32 %v299, 1.442695
    %v318 = vpow.pop %v317
    %v319 = vmul.f32 %v300, 1.442695
    %v320 = vpow.pop %v319
    %v321 = vmul.f32 %v301, 1.442695
    %v322 = vpow.pop %v321
    %v323 = vmul.f32 %v302, 1.442695
    %v324 = vpow.pop %v323
    %v325 = vmul.f32 %v303, 1.442695
    %v326 = vpow.pop %v325
    %v327 = vmul.f32 %v304, 1.442695
    %v328 = vpow.pop %v327
    %v329 = vmul.f32 %v305, 1.442695
    %v330 = vpow.pop %v329
    %v331 = vmul.f32 %v306, 1.442695
    %v332 = vpow.pop %v331
    %v333 = vmul.f32 %v307, 1.442695
    %v334 = vpow.pop %v333
    %v335 = vmul.f32 %v308, 1.442695
    %v336 = vpow.pop %v335
    %v337 = vmul.f32 %v309, 1.442695
    %v338 = vpow.pop %v337
    %v339 = vmul.f32 %v310, 1.442695
    %v340 = vpow.pop %v339
    %v341 = vmul.f32 %v311, 1.442695
    %v342 = vpow.pop %v341
    %v343 = vmul.f32 %v312, 1.442695
    %v344 = vpow.pop %v343
    %v345 = vadd.f32 %v314, 1.0
    %v346 = vadd.f32 %v316, 1.0
    %v347 = vadd.f32 %v318, 1.0
    %v348 = vadd.f32 %v320, 1.0
    %v349 = vadd.f32 %v322, 1.0
    %v350 = vadd.f32 %v324, 1.0
    %v351 = vadd.f32 %v326, 1.0
    %v352 = vadd.f32 %v328, 1.0
    %v353 = vadd.f32 %v330, 1.0
    %v354 = vadd.f32 %v332, 1.0
    %v355 = vadd.f32 %v334, 1.0
    %v356 = vadd.f32 %v336, 1.0
    %v357 = vadd.f32 %v338, 1.0
    %v358 = vadd.f32 %v340, 1.0
    %v359 = vadd.f32 %v342, 1.0
    %v360 = vadd.f32 %v344, 1.0
    %v361 = vrcp.pop %v345
    %v362 = vrcp.pop %v346
    %v363 = vrcp.pop %v347
    %v364 = vrcp.pop %v348
    %v365 = vrcp.pop %v349
    %v366 = vrcp.pop %v350
    %v367 = vrcp.pop %v351
    %v368 = vrcp.pop %v352
    %v369 = vrcp.pop %v353
    %v370 = vrcp.pop %v354
    %v371 = vrcp.pop %v355
    %v372 = vrcp.pop %v356
    %v373 = vrcp.pop %v357
    %v374 = vrcp.pop %v358
    %v375 = vrcp.pop %v359
    %v376 = vrcp.pop %v360
    %v393 = vlaneseq
    %v394 = vand.u32 %v393, 127
    %v395 = vlaneseq
    %v396 = vshrl.u32 %v395, 7
    %v397 = vsub.s32 %v394, %v396
    %v398 = vrot.slane %v361, %v397
    %v399 = vadd.s32 %v394, 4294967288
    %v400 = vlaneseq
    %v401 = vshrl.u32 %v400, 7
    %v402 = vsub.s32 %v399, %v401
    %v403 = vrot.slane %v362, %v402
    %vm404 = vcmask 130112
    %v405 = vsel %vm404, %v403, %v398
    %v406 = vadd.s32 %v394, 4294967280
    %v407 = vlaneseq
    %v408 = vshrl.u32 %v407, 7
    %v409 = vsub.s32 %v406, %v408
    %v410 = vrot.slane %v363, %v409
    %vm411 = vcmask 195712
    %v412 = vsel %vm411, %v410, %v405
    %v413 = vadd.s32 %v394, 4294967272
    %v414 = vlaneseq
    %v415 = vshrl.u32 %v414, 7
    %v416 = vsub.s32 %v413, %v415
    %v417 = vrot.slane %v364, %v416
    %vm418 = vcmask 261312
    %v419 = vsel %vm418, %v417, %v412
    %v420 = vadd.s32 %v394, 4294967264
    %v421 = vlaneseq
    %v422 = vshrl.u32 %v421, 7
    %v423 = vsub.s32 %v420, %v422
    %v424 = vrot.slane %v365, %v423
    %vm425 = vcmask 326912
    %v426 = vsel %vm425, %v424, %v419
    %v427 = vadd.s32 %v394, 4294967256
    %v428 = vlaneseq
    %v429 = vshrl.u32 %v428, 7
    %v430 = vsub.s32 %v427, %v429
    %v431 = vrot.slane %v366, %v430
    %vm432 = vcmask 392512
    %v433 = vsel %vm432, %v431, %v426
    %v434 = vadd.s32 %v394, 4294967248
    %v435 = vlaneseq
    %v436 = vshrl.u32 %v435, 7
    %v437 = vsub.s32 %v434, %v436
    %v438 = vrot.slane %v367, %v437
    %vm439 = vcmask 458112
    %v440 = vsel %vm439, %v438, %v433
    %v441 = vadd.s32 %v394, 4294967240
    %v442 = vlaneseq
    %v443 = vshrl.u32 %v442, 7
    %v444 = vsub.s32 %v441, %v443
    %v445 = vrot.slane %v368, %v444
    %vm446 = vcmask 523712
    %v447 = vsel %vm446, %v445, %v440
    %v448 = vadd.s32 %v394, 4294967232
    %v449 = vlaneseq
    %v450 = vshrl.u32 %v449, 7
    %v451 = vsub.s32 %v448, %v450
    %v452 = vrot.slane %v369, %v451
    %vm453 = vcmask 589312
    %v454 = vsel %vm453, %v452, %v447
    %v455 = vadd.s32 %v394, 4294967224
    %v456 = vlaneseq
    %v457 = vshrl.u32 %v456, 7
    %v458 = vsub.s32 %v455, %v457
    %v459 = vrot.slane %v370, %v458
    %vm460 = vcmask 654912
    %v461 = vsel %vm460, %v459, %v454
    %v462 = vadd.s32 %v394, 4294967216
    %v463 = vlaneseq
    %v464 = vshrl.u32 %v463, 7
    %v465 = vsub.s32 %v462, %v464
    %v466 = vrot.slane %v371, %v465
    %vm467 = vcmask 720512
    %v468 = vsel %vm467, %v466, %v461
    %v469 = vadd.s32 %v394, 4294967208
    %v470 = vlaneseq
    %v471 = vshrl.u32 %v470, 7
    %v472 = vsub.s32 %v469, %v471
    %v473 = vrot.slane %v372, %v472
    %vm474 = vcmask 786112
    %v475 = vsel %vm474, %v473, %v468
    %v476 = vadd.s32 %v394, 4294967200
    %v477 = vlaneseq
    %v478 = vshrl.u32 %v477, 7
    %v479 = vsub.s32 %v476, %v478
    %v480 = vrot.slane %v373, %v479
    %vm481 = vcmask 851712
    %v482 = vsel %vm481, %v480, %v475
    %v483 = vadd.s32 %v394, 4294967192
    %v484 = vlaneseq
    %v485 = vshrl.u32 %v484, 7
    %v486 = vsub.s32 %v483, %v485
    %v487 = vrot.slane %v374, %v486
    %vm488 = vcmask 917312
    %v489 = vsel %vm488, %v487, %v482
    %v490 = vadd.s32 %v394, 4294967184
    %v491 = vlaneseq
    %v492 = vshrl.u32 %v491, 7
    %v493 = vsub.s32 %v490, %v492
    %v494 = vrot.slane %v375, %v493
    %vm495 = vcmask 982912
    %v496 = vsel %vm495, %v494, %v489
    %v497 = vadd.s32 %v394, 4294967176
    %v498 = vlaneseq
    %v499 = vshrl.u32 %v498, 7
    %v500 = vsub.s32 %v497, %v499
    %v501 = vrot.slane %v376, %v500
    %vm502 = vcmask 1048512
    %v503 = vsel %vm502, %v501, %v496
    %505 = vst [vmem:[#allocation3] sm:$0x1] %v503
    // Predicated region
    $region22: #{tpu_custom_call.1} parent=1 // pred_check
      _
    $region23: #{tpu_custom_call.1} parent=1 // pred_check_branch
      %507 = sbr.rel (0) target = $region25
    $region24: #{tpu_custom_call.1} parent=1 // pred_region
      %s509 = ssub.s32 16, 16
      %510 = vsyncadd [#allocation4], %s509
      %s512 = sshll.u32 [#allocation3], 4
      %s513 = int_to_ptr.vmem [resolvable:$true] %s512
      %515 = dma.vmem_to_hbm [thread:$0]  %s513, 16, %s5, [#allocation4]
    $region25: #{tpu_custom_call.1} parent=1 // pred_fallthru
      _
    // Predicated region
    $region26: #{tpu_custom_call.1} parent=1 // pred_check
      _
    $region27: #{tpu_custom_call.1} parent=1 // pred_check_branch
      %517 = sbr.rel (0) target = $region29
    $region28: #{tpu_custom_call.1} parent=1 // pred_region
      %518 = dma.done [#allocation4], 16
    $region29: #{tpu_custom_call.1} parent=1 // pred_fallthru
      _
    %519 = vsyncpa [#allocation4], 1

</llo_original>
